<compile_context>
chip_gen: v7x
topology: tpu7x:2x2x1
jax: 0.10.0
libtpu: 0.0.40
codegen_flags: <defaults>
</compile_context>

<pallas_src>
import jax
import jax.numpy as jnp
from jax import lax
from jax.experimental import pallas as pl
from jax.experimental.pallas import tpu as pltpu

# dtype used for matmul operands (weights stored / activations cast); f32 accumulate.
MATMUL_DTYPE = jnp.bfloat16


def _softplus(x):
    # matches F.softplus default (beta=1): log(1 + exp(x)), numerically stable, f32
    return jnp.logaddexp(x, 0.0)


def encoder_kernel(
    m_ref, r_ref,
    w1_ref, b1_ref,
    w2_ref, b2_ref,
    wc1_ref, wc2_ref, bc_ref,
    wh_ref, bh_ref,
    out_ref,
):
    f32 = jnp.float32
    m = m_ref[...]            # (TB, num_signals)           bf16
    r = r_ref[...]            # (TB, num_states*num_groups) bf16

    # h1 = softplus(fc1(m)); h2 = softplus(fc2(r)); dropout == identity (eval)
    h1 = _softplus(jnp.dot(m, w1_ref[...], preferred_element_type=f32) + b1_ref[...])
    h2 = _softplus(jnp.dot(r, w2_ref[...], preferred_element_type=f32) + b2_ref[...])

    # h = softplus(fc_comb(cat(h1, h2))) == softplus(h1 @ Wc_top + h2 @ Wc_bot + bc)
    h = _softplus(
        jnp.dot(h1.astype(wc1_ref.dtype), wc1_ref[...], preferred_element_type=f32)
        + jnp.dot(h2.astype(wc2_ref.dtype), wc2_ref[...], preferred_element_type=f32)
        + bc_ref[...]
    )

    # fused heads: one matmul producing [loc | logvar] packed along lanes
    head = jnp.dot(h.astype(wh_ref.dtype), wh_ref[...], preferred_element_type=f32) + bh_ref[...]

    # first num_states lanes -> loc unchanged; last num_states lanes -> exp(0.5*logvar)
    num_states = head.shape[-1] // 2
    col = lax.broadcasted_iota(jnp.int32, head.shape, dimension=1)
    out = jnp.where(col < num_states, head, jnp.exp(0.5 * head))
    out_ref[...] = out.astype(out_ref.dtype)


def _batch_tile(B, max_tb=1024):
    """Largest batch tile <= max_tb that divides B (multiple of 8 when possible)."""
    if B <= max_tb:
        return B
    for tb in range(max_tb - (max_tb % 8), 7, -8):
        if B % tb == 0:
            return tb
    return max_tb  # remainder handled by pl.cdiv grid (partial last block)


def encoder_forward(m, r, params, *, max_tb=1024):
    """m: (B, num_signals); r: (B, num_states, num_groups). Returns (loc, scale)."""
    B = m.shape[0]
    r_flat = r.reshape(B, -1)

    (w1, b1, w2, b2, wc1, wc2, bc, wh, bh) = params
    num_signals = w1.shape[0]
    nsg = w2.shape[0]
    hidden_sig = w1.shape[1]
    hidden_ref = w2.shape[1]
    hidden_comb = wc1.shape[1]
    two_ns = wh.shape[1]
    num_states = two_ns // 2

    # bf16 activations on the DMA path; accumulation stays f32 inside the kernel.
    m_in = m.astype(MATMUL_DTYPE)
    r_in = r_flat.astype(MATMUL_DTYPE)

    tb = _batch_tile(B, max_tb)
    grid = (pl.cdiv(B, tb),)

    def act_spec(feat):
        return pl.BlockSpec((tb, feat), lambda i: (i, 0))

    def resident_spec(arr):
        shape = arr.shape
        return pl.BlockSpec(shape, lambda i: (0, 0))

    in_specs = [
        act_spec(num_signals),          # m
        act_spec(nsg),                  # r
        resident_spec(w1), resident_spec(b1),
        resident_spec(w2), resident_spec(b2),
        resident_spec(wc1), resident_spec(wc2), resident_spec(bc),
        resident_spec(wh), resident_spec(bh),
    ]
    out_spec = pl.BlockSpec((tb, two_ns), lambda i: (i, 0))
    out_shape = jax.ShapeDtypeStruct((B, two_ns), jnp.float32)

    # advisory cost estimate
    flops = 2 * B * (
        num_signals * hidden_sig
        + nsg * hidden_ref
        + hidden_sig * hidden_comb
        + hidden_ref * hidden_comb
        + hidden_comb * two_ns
    )
    transcendentals = B * (hidden_sig + hidden_ref + hidden_comb + num_states)
    weight_bytes = sum(int(x.size) * x.dtype.itemsize
                       for x in (w1, b1, w2, b2, wc1, wc2, bc, wh, bh))
    bytes_accessed = (
        int(m_in.size) * m_in.dtype.itemsize
        + int(r_in.size) * r_in.dtype.itemsize
        + B * two_ns * 4
        + weight_bytes
    )

    packed = pl.pallas_call(
        encoder_kernel,
        out_shape=out_shape,
        grid=grid,
        in_specs=in_specs,
        out_specs=out_spec,
        compiler_params=pltpu.CompilerParams(
            # batch axis is embarrassingly parallel -> megacore sharding on v7x
            dimension_semantics=("parallel",),
        ),
        cost_estimate=pl.CostEstimate(
            flops=flops,
            transcendentals=transcendentals,
            bytes_accessed=bytes_accessed,
        ),
    )(m_in, r_in, w1, b1, w2, b2, wc1, wc2, bc, wh, bh)

    loc = packed[:, :num_states]
    scale = packed[:, num_states:]
    return loc, scale


def init_params(key, num_signals, num_states, num_groups,
                hidden_sig, hidden_ref, hidden_comb):
    """Deterministic synthetic parameters; weights stored as (in, out)."""
    ks = jax.random.split(key, 10)

    def lin(kw, kb, fan_in, fan_out):
        bound = 1.0 / jnp.sqrt(fan_in)
        w = jax.random.uniform(kw, (fan_in, fan_out), jnp.float32, -bound, bound)
        b = jax.random.uniform(kb, (1, fan_out), jnp.float32, -bound, bound)
        return w, b

    w1, b1 = lin(ks[0], ks[1], num_signals, hidden_sig)
    w2, b2 = lin(ks[2], ks[3], num_states * num_groups, hidden_ref)
    wc, bc = lin(ks[4], ks[5], hidden_sig + hidden_ref, hidden_comb)
    wmu, bmu = lin(ks[6], ks[7], hidden_comb, num_states)
    wlv, blv = lin(ks[8], ks[9], hidden_comb, num_states)

    # split combiner weight to avoid an in-kernel concat: rows [0:hidden_sig] act
    # on h1, rows [hidden_sig:] act on h2.
    wc1 = wc[:hidden_sig, :]
    wc2 = wc[hidden_sig:, :]

    # fuse the two heads into one matmul: columns [0:num_states]=mu, [num_states:]=logvar
    wh = jnp.concatenate([wmu, wlv], axis=1)
    bh = jnp.concatenate([bmu, blv], axis=1)

    # weights in bf16 (matmul operands), biases stay f32 (added after f32 accumulation)
    cast = lambda w: w.astype(MATMUL_DTYPE)
    return (cast(w1), b1, cast(w2), b2, cast(wc1), cast(wc2), bc, cast(wh), bh)


def reference_forward(m, r, params):
    """Pure-JAX reference mirroring the PyTorch forward (eval mode) with the same
    bf16-operand / f32-accumulation matmul convention as the kernel."""
    (w1, b1, w2, b2, wc1, wc2, bc, wh, bh) = params
    f32 = jnp.float32
    num_states = wh.shape[1] // 2
    r_flat = r.reshape(r.shape[0], -1)

    m_in = m.astype(MATMUL_DTYPE)
    r_in = r_flat.astype(MATMUL_DTYPE)

    h1 = jax.nn.softplus(jnp.dot(m_in, w1, preferred_element_type=f32) + b1)
    h2 = jax.nn.softplus(jnp.dot(r_in, w2, preferred_element_type=f32) + b2)
    h = jax.nn.softplus(
        jnp.dot(h1.astype(MATMUL_DTYPE), wc1, preferred_element_type=f32)
        + jnp.dot(h2.astype(MATMUL_DTYPE), wc2, preferred_element_type=f32)
        + bc
    )
    head = jnp.dot(h.astype(MATMUL_DTYPE), wh, preferred_element_type=f32) + bh
    loc = head[:, :num_states]
    scale = jnp.exp(0.5 * head[:, num_states:])
    return loc, scale


if __name__ == "__main__":
    # Small, forward-consistent shapes (multiple grid steps: B=64, tile=32)
    B = 64
    num_signals = 16
    num_states = 8
    num_groups = 4
    hidden_sig = 32
    hidden_ref = 32
    hidden_comb = 32

    key = jax.random.PRNGKey(0)
    k_m, k_r, k_p = jax.random.split(key, 3)

    m = jax.random.normal(k_m, (B, num_signals), jnp.float32)
    r = jax.random.normal(k_r, (B, num_states, num_groups), jnp.float32)

    params = init_params(k_p, num_signals, num_states, num_groups,
                         hidden_sig, hidden_ref, hidden_comb)

    loc, scale = encoder_forward(m, r, params, max_tb=32)
    loc = jax.block_until_ready(loc)
    scale = jax.block_until_ready(scale)

    # correctness check against pure-JAX reference (same bf16/f32 math)
    loc_ref, scale_ref = reference_forward(m, r, params)
    assert jnp.allclose(loc, loc_ref, atol=1e-4, rtol=1e-4), "loc mismatch"
    assert jnp.allclose(scale, scale_ref, atol=1e-4, rtol=1e-4), "scale mismatch"

    print("KERNEL_OK")
</pallas_src>

<mosaic_0001>
module attributes {stable_mosaic.version = 11 : i64} {
  func.func @encoder_kernel(%arg0: i32, %arg1: memref<32x16xbf16, #tpu.memory_space<vmem>>, %arg2: memref<32x32xbf16, #tpu.memory_space<vmem>>, %arg3: memref<16x32xbf16, #tpu.memory_space<vmem>>, %arg4: memref<1x32xf32, #tpu.memory_space<vmem>>, %arg5: memref<32x32xbf16, #tpu.memory_space<vmem>>, %arg6: memref<1x32xf32, #tpu.memory_space<vmem>>, %arg7: memref<32x32xbf16, #tpu.memory_space<vmem>>, %arg8: memref<32x32xbf16, #tpu.memory_space<vmem>>, %arg9: memref<1x32xf32, #tpu.memory_space<vmem>>, %arg10: memref<32x16xbf16, #tpu.memory_space<vmem>>, %arg11: memref<1x16xf32, #tpu.memory_space<vmem>>, %arg12: memref<32x16xf32, #tpu.memory_space<vmem>>) attributes {dimension_semantics = [#tpu.dimension_semantics<parallel>], iteration_bounds = array<i64: 2>, scalar_prefetch = 0 : i64, scratch_operands = 0 : i64, tpu.core_type = #tpu.core_type<tc>, window_params = [{transform_indices = @transform_0, window_bounds = array<i64: 32, 16>}, {transform_indices = @transform_1, window_bounds = array<i64: 32, 32>}, {pipeline_mode = #tpu.pipeline_mode<synchronous>, transform_indices = @transform_2, window_bounds = array<i64: 16, 32>}, {pipeline_mode = #tpu.pipeline_mode<synchronous>, transform_indices = @transform_3, window_bounds = array<i64: 1, 32>}, {pipeline_mode = #tpu.pipeline_mode<synchronous>, transform_indices = @transform_4, window_bounds = array<i64: 32, 32>}, {pipeline_mode = #tpu.pipeline_mode<synchronous>, transform_indices = @transform_5, window_bounds = array<i64: 1, 32>}, {pipeline_mode = #tpu.pipeline_mode<synchronous>, transform_indices = @transform_6, window_bounds = array<i64: 32, 32>}, {pipeline_mode = #tpu.pipeline_mode<synchronous>, transform_indices = @transform_7, window_bounds = array<i64: 32, 32>}, {pipeline_mode = #tpu.pipeline_mode<synchronous>, transform_indices = @transform_8, window_bounds = array<i64: 1, 32>}, {pipeline_mode = #tpu.pipeline_mode<synchronous>, transform_indices = @transform_9, window_bounds = array<i64: 32, 16>}, {pipeline_mode = #tpu.pipeline_mode<synchronous>, transform_indices = @transform_10, window_bounds = array<i64: 1, 16>}, {transform_indices = @transform_11, window_bounds = array<i64: 32, 16>}]} {
    %c0 = arith.constant 0 : index
    %c0_0 = arith.constant 0 : index
    %0 = vector.load %arg1[%c0, %c0_0] : memref<32x16xbf16, #tpu.memory_space<vmem>>, vector<32x16xbf16>
    %c0_1 = arith.constant 0 : index
    %c0_2 = arith.constant 0 : index
    %1 = vector.load %arg2[%c0_1, %c0_2] : memref<32x32xbf16, #tpu.memory_space<vmem>>, vector<32x32xbf16>
    %c0_3 = arith.constant 0 : index
    %c0_4 = arith.constant 0 : index
    %2 = vector.load %arg3[%c0_3, %c0_4] : memref<16x32xbf16, #tpu.memory_space<vmem>>, vector<16x32xbf16>
    %cst = arith.constant dense<0.000000e+00> : vector<32x32xf32>
    %3 = tpu.matmul %0, %2, %cst {dimension_numbers = #tpu.dot_dimension_numbers<[1], [0], [0], [1], [0, 0, 1, 1], [], []>} : vector<32x16xbf16>, vector<16x32xbf16>, vector<32x32xf32> -> vector<32x32xf32>
    %c0_5 = arith.constant 0 : index
    %c0_6 = arith.constant 0 : index
    %4 = vector.load %arg4[%c0_5, %c0_6] : memref<1x32xf32, #tpu.memory_space<vmem>>, vector<1x32xf32>
    %5 = vector.broadcast %4 : vector<1x32xf32> to vector<32x32xf32>
    %6 = arith.addf %3, %5 : vector<32x32xf32>
    %cst_7 = arith.constant 0.000000e+00 : f32
    %7 = vector.broadcast %cst_7 : f32 to vector<32x32xf32>
    %8 = arith.maximumf %6, %7 : vector<32x32xf32>
    %9 = vector.broadcast %cst_7 : f32 to vector<32x32xf32>
    %10 = arith.subf %6, %9 : vector<32x32xf32>
    %11 = arith.cmpf one, %10, %10 : vector<32x32xf32>
    %12 = vector.broadcast %cst_7 : f32 to vector<32x32xf32>
    %13 = arith.addf %6, %12 : vector<32x32xf32>
    %14 = math.absf %10 : vector<32x32xf32>
    %cst_8 = arith.constant 0.000000e+00 : f32
    %15 = vector.broadcast %cst_8 : f32 to vector<32x32xf32>
    %16 = arith.subf %15, %14 : vector<32x32xf32>
    %17 = math.exp %16 : vector<32x32xf32>
    %18 = math.log1p %17 : vector<32x32xf32>
    %19 = arith.addf %8, %18 : vector<32x32xf32>
    %20 = arith.select %11, %13, %19 : vector<32x32xi1>, vector<32x32xf32>
    %c0_9 = arith.constant 0 : index
    %c0_10 = arith.constant 0 : index
    %21 = vector.load %arg5[%c0_9, %c0_10] : memref<32x32xbf16, #tpu.memory_space<vmem>>, vector<32x32xbf16>
    %cst_11 = arith.constant dense<0.000000e+00> : vector<32x32xf32>
    %22 = tpu.matmul %1, %21, %cst_11 {dimension_numbers = #tpu.dot_dimension_numbers<[1], [0], [0], [1], [0, 0, 1, 1], [], []>} : vector<32x32xbf16>, vector<32x32xbf16>, vector<32x32xf32> -> vector<32x32xf32>
    %c0_12 = arith.constant 0 : index
    %c0_13 = arith.constant 0 : index
    %23 = vector.load %arg6[%c0_12, %c0_13] : memref<1x32xf32, #tpu.memory_space<vmem>>, vector<1x32xf32>
    %24 = vector.broadcast %23 : vector<1x32xf32> to vector<32x32xf32>
    %25 = arith.addf %22, %24 : vector<32x32xf32>
    %cst_14 = arith.constant 0.000000e+00 : f32
    %26 = vector.broadcast %cst_14 : f32 to vector<32x32xf32>
    %27 = arith.maximumf %25, %26 : vector<32x32xf32>
    %28 = vector.broadcast %cst_14 : f32 to vector<32x32xf32>
    %29 = arith.subf %25, %28 : vector<32x32xf32>
    %30 = arith.cmpf one, %29, %29 : vector<32x32xf32>
    %31 = vector.broadcast %cst_14 : f32 to vector<32x32xf32>
    %32 = arith.addf %25, %31 : vector<32x32xf32>
    %33 = math.absf %29 : vector<32x32xf32>
    %cst_15 = arith.constant 0.000000e+00 : f32
    %34 = vector.broadcast %cst_15 : f32 to vector<32x32xf32>
    %35 = arith.subf %34, %33 : vector<32x32xf32>
    %36 = math.exp %35 : vector<32x32xf32>
    %37 = math.log1p %36 : vector<32x32xf32>
    %38 = arith.addf %27, %37 : vector<32x32xf32>
    %39 = arith.select %30, %32, %38 : vector<32x32xi1>, vector<32x32xf32>
    %40 = arith.truncf %20 : vector<32x32xf32> to vector<32x32xbf16>
    %c0_16 = arith.constant 0 : index
    %c0_17 = arith.constant 0 : index
    %41 = vector.load %arg7[%c0_16, %c0_17] : memref<32x32xbf16, #tpu.memory_space<vmem>>, vector<32x32xbf16>
    %cst_18 = arith.constant dense<0.000000e+00> : vector<32x32xf32>
    %42 = tpu.matmul %40, %41, %cst_18 {dimension_numbers = #tpu.dot_dimension_numbers<[1], [0], [0], [1], [0, 0, 1, 1], [], []>} : vector<32x32xbf16>, vector<32x32xbf16>, vector<32x32xf32> -> vector<32x32xf32>
    %43 = arith.truncf %39 : vector<32x32xf32> to vector<32x32xbf16>
    %c0_19 = arith.constant 0 : index
    %c0_20 = arith.constant 0 : index
    %44 = vector.load %arg8[%c0_19, %c0_20] : memref<32x32xbf16, #tpu.memory_space<vmem>>, vector<32x32xbf16>
    %cst_21 = arith.constant dense<0.000000e+00> : vector<32x32xf32>
    %45 = tpu.matmul %43, %44, %cst_21 {dimension_numbers = #tpu.dot_dimension_numbers<[1], [0], [0], [1], [0, 0, 1, 1], [], []>} : vector<32x32xbf16>, vector<32x32xbf16>, vector<32x32xf32> -> vector<32x32xf32>
    %46 = arith.addf %42, %45 : vector<32x32xf32>
    %c0_22 = arith.constant 0 : index
    %c0_23 = arith.constant 0 : index
    %47 = vector.load %arg9[%c0_22, %c0_23] : memref<1x32xf32, #tpu.memory_space<vmem>>, vector<1x32xf32>
    %48 = vector.broadcast %47 : vector<1x32xf32> to vector<32x32xf32>
    %49 = arith.addf %46, %48 : vector<32x32xf32>
    %cst_24 = arith.constant 0.000000e+00 : f32
    %50 = vector.broadcast %cst_24 : f32 to vector<32x32xf32>
    %51 = arith.maximumf %49, %50 : vector<32x32xf32>
    %52 = vector.broadcast %cst_24 : f32 to vector<32x32xf32>
    %53 = arith.subf %49, %52 : vector<32x32xf32>
    %54 = arith.cmpf one, %53, %53 : vector<32x32xf32>
    %55 = vector.broadcast %cst_24 : f32 to vector<32x32xf32>
    %56 = arith.addf %49, %55 : vector<32x32xf32>
    %57 = math.absf %53 : vector<32x32xf32>
    %cst_25 = arith.constant 0.000000e+00 : f32
    %58 = vector.broadcast %cst_25 : f32 to vector<32x32xf32>
    %59 = arith.subf %58, %57 : vector<32x32xf32>
    %60 = math.exp %59 : vector<32x32xf32>
    %61 = math.log1p %60 : vector<32x32xf32>
    %62 = arith.addf %51, %61 : vector<32x32xf32>
    %63 = arith.select %54, %56, %62 : vector<32x32xi1>, vector<32x32xf32>
    %64 = arith.truncf %63 : vector<32x32xf32> to vector<32x32xbf16>
    %c0_26 = arith.constant 0 : index
    %c0_27 = arith.constant 0 : index
    %65 = vector.load %arg10[%c0_26, %c0_27] : memref<32x16xbf16, #tpu.memory_space<vmem>>, vector<32x16xbf16>
    %cst_28 = arith.constant dense<0.000000e+00> : vector<32x16xf32>
    %66 = tpu.matmul %64, %65, %cst_28 {dimension_numbers = #tpu.dot_dimension_numbers<[1], [0], [0], [1], [0, 0, 1, 1], [], []>} : vector<32x32xbf16>, vector<32x16xbf16>, vector<32x16xf32> -> vector<32x16xf32>
    %c0_29 = arith.constant 0 : index
    %c0_30 = arith.constant 0 : index
    %67 = vector.load %arg11[%c0_29, %c0_30] : memref<1x16xf32, #tpu.memory_space<vmem>>, vector<1x16xf32>
    %68 = vector.broadcast %67 : vector<1x16xf32> to vector<32x16xf32>
    %69 = arith.addf %66, %68 : vector<32x16xf32>
    %70 = tpu.iota {dimensions = array<i32: 1>} : vector<32x16xi32>
    %c8_i32 = arith.constant 8 : i32
    %71 = vector.broadcast %c8_i32 : i32 to vector<32x16xi32>
    %72 = arith.cmpi slt, %70, %71 : vector<32x16xi32>
    %cst_31 = arith.constant 5.000000e-01 : f32
    %73 = vector.broadcast %cst_31 : f32 to vector<32x16xf32>
    %74 = arith.mulf %73, %69 : vector<32x16xf32>
    %75 = math.exp %74 : vector<32x16xf32>
    %76 = arith.select %72, %69, %75 : vector<32x16xi1>, vector<32x16xf32>
    %c0_32 = arith.constant 0 : index
    %c0_33 = arith.constant 0 : index
    %77 = vector.load %arg12[%c0_32, %c0_33] : memref<32x16xf32, #tpu.memory_space<vmem>>, vector<32x16xf32>
    tpu.vector_store %arg12[%c0_32, %c0_33], %76 {strides = array<i32>} : memref<32x16xf32, #tpu.memory_space<vmem>>, vector<32x16xf32>,
    return
  }
  func.func @transform_0(%arg0: i32) -> (i32, i32) {
    %c0_i32 = arith.constant 0 : i32
    %c0_i32_0 = arith.constant 0 : i32
    return %arg0, %c0_i32 : i32, i32
  }
  func.func @transform_1(%arg0: i32) -> (i32, i32) {
    %c0_i32 = arith.constant 0 : i32
    %c0_i32_0 = arith.constant 0 : i32
    return %arg0, %c0_i32 : i32, i32
  }
  func.func @transform_2(%arg0: i32) -> (i32, i32) {
    %c0_i32 = arith.constant 0 : i32
    %c0_i32_0 = arith.constant 0 : i32
    %c0_i32_1 = arith.constant 0 : i32
    return %c0_i32, %c0_i32_0 : i32, i32
  }
  func.func @transform_3(%arg0: i32) -> (i32, i32) {
    %c0_i32 = arith.constant 0 : i32
    %c0_i32_0 = arith.constant 0 : i32
    %c0_i32_1 = arith.constant 0 : i32
    return %c0_i32, %c0_i32_0 : i32, i32
  }
  func.func @transform_4(%arg0: i32) -> (i32, i32) {
    %c0_i32 = arith.constant 0 : i32
    %c0_i32_0 = arith.constant 0 : i32
    %c0_i32_1 = arith.constant 0 : i32
    return %c0_i32, %c0_i32_0 : i32, i32
  }
  func.func @transform_5(%arg0: i32) -> (i32, i32) {
    %c0_i32 = arith.constant 0 : i32
    %c0_i32_0 = arith.constant 0 : i32
    %c0_i32_1 = arith.constant 0 : i32
    return %c0_i32, %c0_i32_0 : i32, i32
  }
  func.func @transform_6(%arg0: i32) -> (i32, i32) {
    %c0_i32 = arith.constant 0 : i32
    %c0_i32_0 = arith.constant 0 : i32
    %c0_i32_1 = arith.constant 0 : i32
    return %c0_i32, %c0_i32_0 : i32, i32
  }
  func.func @transform_7(%arg0: i32) -> (i32, i32) {
    %c0_i32 = arith.constant 0 : i32
    %c0_i32_0 = arith.constant 0 : i32
    %c0_i32_1 = arith.constant 0 : i32
    return %c0_i32, %c0_i32_0 : i32, i32
  }
  func.func @transform_8(%arg0: i32) -> (i32, i32) {
    %c0_i32 = arith.constant 0 : i32
    %c0_i32_0 = arith.constant 0 : i32
    %c0_i32_1 = arith.constant 0 : i32
    return %c0_i32, %c0_i32_0 : i32, i32
  }
  func.func @transform_9(%arg0: i32) -> (i32, i32) {
    %c0_i32 = arith.constant 0 : i32
    %c0_i32_0 = arith.constant 0 : i32
    %c0_i32_1 = arith.constant 0 : i32
    return %c0_i32, %c0_i32_0 : i32, i32
  }
  func.func @transform_10(%arg0: i32) -> (i32, i32) {
    %c0_i32 = arith.constant 0 : i32
    %c0_i32_0 = arith.constant 0 : i32
    %c0_i32_1 = arith.constant 0 : i32
    return %c0_i32, %c0_i32_0 : i32, i32
  }
  func.func @transform_11(%arg0: i32) -> (i32, i32) {
    %c0_i32 = arith.constant 0 : i32
    %c0_i32_0 = arith.constant 0 : i32
    return %arg0, %c0_i32 : i32, i32
  }
}

</mosaic_0001>

<llo_original>
// kernel: tpu_custom_call.1
$region0: #{tpu_custom_call.1}
  #allocation0 [shape = 'u32[]', space=smem, size = 0x4, offset = 0x4, fixed_abs, tag = 'smem constant byte address 0x4 - core index']
  #allocation1 [shape = 'u32[144,128]{1,0:T(1,128)}', space=vmem, size = 0x12000, scoped, tag = 'internal scratch']
  %s0 = inlined_call_operand.vmem [shape: bf16[64,16], index: 0, kind: input, shape index: {}]
  %s1 = inlined_call_operand.vmem [shape: bf16[64,32], index: 1, kind: input, shape index: {}]
  %s2 = inlined_call_operand.vmem [shape: bf16[16,32], index: 2, kind: input, shape index: {}]
  %s3 = inlined_call_operand.vmem [shape: f32[1,32], index: 3, kind: input, shape index: {}]
  %s4 = inlined_call_operand.vmem [shape: bf16[32,32], index: 4, kind: input, shape index: {}]
  %s5 = inlined_call_operand.vmem [shape: f32[1,32], index: 5, kind: input, shape index: {}]
  %s6 = inlined_call_operand.vmem [shape: bf16[32,32], index: 6, kind: input, shape index: {}]
  %s7 = inlined_call_operand.vmem [shape: bf16[32,32], index: 7, kind: input, shape index: {}]
  %s8 = inlined_call_operand.vmem [shape: f32[1,32], index: 8, kind: input, shape index: {}]
  %s9 = inlined_call_operand.vmem [shape: bf16[32,16], index: 9, kind: input, shape index: {}]
  %s10 = inlined_call_operand.vmem [shape: f32[1,16], index: 10, kind: input, shape index: {}]
  %s11 = inlined_call_operand.vmem [shape: f32[64,16], index: 11, kind: output, shape index: {}]
  %s12 = sld [smem:[#allocation0]]
  $region77: #{tpu_custom_call.1} parent=0
    _
  %s14 = ssub.s32 1, %s12
  %s15 = scalar_select 0, %s14, %s12
  loop: start=0, step=1, limit=4
  $region2: #{tpu_custom_call.1} parent=0 // loop_pre_header
    _
  $region3: #{tpu_custom_call.1} parent=0 // loop_header
    %s17 = sphi 0, %s21
    %p18 = scmp.ge.s32.totalorder %s17, 4
    %s27 = sphi 0, %s29
    %s30 = sphi 0, %s27
    %s31 = sphi 0, %s30
    %s47 = sphi 0, %s31
    %s53 = sphi 0, %s55
    %s56 = sphi 0, %s53
    %s57 = sphi 0, %s56
    %s73 = sphi 0, %s57
    %s77 = sphi 0, %s77
    %s79 = sphi 0, %s77
    %s80 = sphi 0, %s79
    %s94 = sphi 0, %s80
    %s98 = sphi 0, %s98
    %s100 = sphi 0, %s98
    %s101 = sphi 0, %s100
    %s115 = sphi 0, %s101
    %s119 = sphi 0, %s119
    %s121 = sphi 0, %s119
    %s122 = sphi 0, %s121
    %s136 = sphi 0, %s122
    %s140 = sphi 0, %s140
    %s142 = sphi 0, %s140
    %s143 = sphi 0, %s142
    %s157 = sphi 0, %s143
    %s161 = sphi 0, %s161
    %s163 = sphi 0, %s161
    %s164 = sphi 0, %s163
    %s178 = sphi 0, %s164
    %s182 = sphi 0, %s182
    %s184 = sphi 0, %s182
    %s185 = sphi 0, %s184
    %s199 = sphi 0, %s185
    %s203 = sphi 0, %s203
    %s205 = sphi 0, %s203
    %s206 = sphi 0, %s205
    %s220 = sphi 0, %s206
    %s224 = sphi 0, %s224
    %s226 = sphi 0, %s224
    %s227 = sphi 0, %s226
    %s241 = sphi 0, %s227
    %s245 = sphi 0, %s245
    %s247 = sphi 0, %s245
    %s248 = sphi 0, %s247
    %s262 = sphi 0, %s248
    %s268 = sphi 0, %s270
    %s271 = sphi 0, %s268
    %s272 = sphi 0, %s271
    %s288 = sphi 0, %s272
  $region4: #{tpu_custom_call.1} parent=0 // loop_header_branch
    %20 = sbr.rel (%p18) target = $region8
  $region5: #{tpu_custom_call.1} parent=0 // loop_body
    %s22 = ssub.s32 %s17, 1
    %s23 = ssub.s32 %s17, 2
    %s24 = sadd.s32 %s17, 1
    %s25 = ssub.s32 %s17, %s24
    %p26 = scmp.eq.s32.totalorder %s25, 0
    %s28 = sadd.s32 %s27, 1
    %s29 = scalar_select %p26, %s27, %s28
    %p32 = pneg %p26
    %p33 = scmp.eq.s32.totalorder %s17, 1
    %p34 = por %p32, %p33
    %p35 = scmp.ne.s32.totalorder %s27, %s30
    %p36 = scmp.eq.s32.totalorder %s17, 0
    %p37 = por %p35, %p36
    %p38 = scmp.ne.s32.totalorder %s27, %s30
    %p39 = scmp.eq.s32.totalorder %s22, 1
    %p40 = por %p38, %p39
    %p41 = scmp.ne.s32.totalorder %s30, %s31
    %p42 = scmp.eq.s32.totalorder %s22, 0
    %p43 = por %p41, %p42
    %p44 = scmp.ne.s32.totalorder %s30, %s31
    %p45 = scmp.eq.s32.totalorder %s23, 1
    %p46 = por %p44, %p45
    %p48 = scmp.ne.s32.totalorder %s31, %s47
    %p49 = scmp.eq.s32.totalorder %s23, 0
    %p50 = por %p48, %p49
    %s51 = ssub.s32 %s17, %s24
    %p52 = scmp.eq.s32.totalorder %s51, 0
    %s54 = sadd.s32 %s53, 1
    %s55 = scalar_select %p52, %s53, %s54
    %p58 = pneg %p52
    %p59 = scmp.eq.s32.totalorder %s17, 1
    %p60 = por %p58, %p59
    %p61 = scmp.ne.s32.totalorder %s53, %s56
    %p62 = scmp.eq.s32.totalorder %s17, 0
    %p63 = por %p61, %p62
    %p64 = scmp.ne.s32.totalorder %s53, %s56
    %p65 = scmp.eq.s32.totalorder %s22, 1
    %p66 = por %p64, %p65
    %p67 = scmp.ne.s32.totalorder %s56, %s57
    %p68 = scmp.eq.s32.totalorder %s22, 0
    %p69 = por %p67, %p68
    %p70 = scmp.ne.s32.totalorder %s56, %s57
    %p71 = scmp.eq.s32.totalorder %s23, 1
    %p72 = por %p70, %p71
    %p74 = scmp.ne.s32.totalorder %s57, %s73
    %p75 = scmp.eq.s32.totalorder %s23, 0
    %p76 = por %p74, %p75
    %s78 = sadd.s32 %s77, 1
    %p81 = scmp.eq.s32.totalorder %s17, 1
    %p82 = scmp.ne.s32.totalorder %s77, %s79
    %p83 = scmp.eq.s32.totalorder %s17, 0
    %p84 = por %p82, %p83
    %p85 = scmp.ne.s32.totalorder %s77, %s79
    %p86 = scmp.eq.s32.totalorder %s22, 1
    %p87 = por %p85, %p86
    %p88 = scmp.ne.s32.totalorder %s79, %s80
    %p89 = scmp.eq.s32.totalorder %s22, 0
    %p90 = por %p88, %p89
    %p91 = scmp.ne.s32.totalorder %s79, %s80
    %p92 = scmp.eq.s32.totalorder %s23, 1
    %p93 = por %p91, %p92
    %p95 = scmp.ne.s32.totalorder %s80, %s94
    %p96 = scmp.eq.s32.totalorder %s23, 0
    %p97 = por %p95, %p96
    %s99 = sadd.s32 %s98, 1
    %p102 = scmp.eq.s32.totalorder %s17, 1
    %p103 = scmp.ne.s32.totalorder %s98, %s100
    %p104 = scmp.eq.s32.totalorder %s17, 0
    %p105 = por %p103, %p104
    %p106 = scmp.ne.s32.totalorder %s98, %s100
    %p107 = scmp.eq.s32.totalorder %s22, 1
    %p108 = por %p106, %p107
    %p109 = scmp.ne.s32.totalorder %s100, %s101
    %p110 = scmp.eq.s32.totalorder %s22, 0
    %p111 = por %p109, %p110
    %p112 = scmp.ne.s32.totalorder %s100, %s101
    %p113 = scmp.eq.s32.totalorder %s23, 1
    %p114 = por %p112, %p113
    %p116 = scmp.ne.s32.totalorder %s101, %s115
    %p117 = scmp.eq.s32.totalorder %s23, 0
    %p118 = por %p116, %p117
    %s120 = sadd.s32 %s119, 1
    %p123 = scmp.eq.s32.totalorder %s17, 1
    %p124 = scmp.ne.s32.totalorder %s119, %s121
    %p125 = scmp.eq.s32.totalorder %s17, 0
    %p126 = por %p124, %p125
    %p127 = scmp.ne.s32.totalorder %s119, %s121
    %p128 = scmp.eq.s32.totalorder %s22, 1
    %p129 = por %p127, %p128
    %p130 = scmp.ne.s32.totalorder %s121, %s122
    %p131 = scmp.eq.s32.totalorder %s22, 0
    %p132 = por %p130, %p131
    %p133 = scmp.ne.s32.totalorder %s121, %s122
    %p134 = scmp.eq.s32.totalorder %s23, 1
    %p135 = por %p133, %p134
    %p137 = scmp.ne.s32.totalorder %s122, %s136
    %p138 = scmp.eq.s32.totalorder %s23, 0
    %p139 = por %p137, %p138
    %s141 = sadd.s32 %s140, 1
    %p144 = scmp.eq.s32.totalorder %s17, 1
    %p145 = scmp.ne.s32.totalorder %s140, %s142
    %p146 = scmp.eq.s32.totalorder %s17, 0
    %p147 = por %p145, %p146
    %p148 = scmp.ne.s32.totalorder %s140, %s142
    %p149 = scmp.eq.s32.totalorder %s22, 1
    %p150 = por %p148, %p149
    %p151 = scmp.ne.s32.totalorder %s142, %s143
    %p152 = scmp.eq.s32.totalorder %s22, 0
    %p153 = por %p151, %p152
    %p154 = scmp.ne.s32.totalorder %s142, %s143
    %p155 = scmp.eq.s32.totalorder %s23, 1
    %p156 = por %p154, %p155
    %p158 = scmp.ne.s32.totalorder %s143, %s157
    %p159 = scmp.eq.s32.totalorder %s23, 0
    %p160 = por %p158, %p159
    %s162 = sadd.s32 %s161, 1
    %p165 = scmp.eq.s32.totalorder %s17, 1
    %p166 = scmp.ne.s32.totalorder %s161, %s163
    %p167 = scmp.eq.s32.totalorder %s17, 0
    %p168 = por %p166, %p167
    %p169 = scmp.ne.s32.totalorder %s161, %s163
    %p170 = scmp.eq.s32.totalorder %s22, 1
    %p171 = por %p169, %p170
    %p172 = scmp.ne.s32.totalorder %s163, %s164
    %p173 = scmp.eq.s32.totalorder %s22, 0
    %p174 = por %p172, %p173
    %p175 = scmp.ne.s32.totalorder %s163, %s164
    %p176 = scmp.eq.s32.totalorder %s23, 1
    %p177 = por %p175, %p176
    %p179 = scmp.ne.s32.totalorder %s164, %s178
    %p180 = scmp.eq.s32.totalorder %s23, 0
    %p181 = por %p179, %p180
    %s183 = sadd.s32 %s182, 1
    %p186 = scmp.eq.s32.totalorder %s17, 1
    %p187 = scmp.ne.s32.totalorder %s182, %s184
    %p188 = scmp.eq.s32.totalorder %s17, 0
    %p189 = por %p187, %p188
    %p190 = scmp.ne.s32.totalorder %s182, %s184
    %p191 = scmp.eq.s32.totalorder %s22, 1
    %p192 = por %p190, %p191
    %p193 = scmp.ne.s32.totalorder %s184, %s185
    %p194 = scmp.eq.s32.totalorder %s22, 0
    %p195 = por %p193, %p194
    %p196 = scmp.ne.s32.totalorder %s184, %s185
    %p197 = scmp.eq.s32.totalorder %s23, 1
    %p198 = por %p196, %p197
    %p200 = scmp.ne.s32.totalorder %s185, %s199
    %p201 = scmp.eq.s32.totalorder %s23, 0
    %p202 = por %p200, %p201
    %s204 = sadd.s32 %s203, 1
    %p207 = scmp.eq.s32.totalorder %s17, 1
    %p208 = scmp.ne.s32.totalorder %s203, %s205
    %p209 = scmp.eq.s32.totalorder %s17, 0
    %p210 = por %p208, %p209
    %p211 = scmp.ne.s32.totalorder %s203, %s205
    %p212 = scmp.eq.s32.totalorder %s22, 1
    %p213 = por %p211, %p212
    %p214 = scmp.ne.s32.totalorder %s205, %s206
    %p215 = scmp.eq.s32.totalorder %s22, 0
    %p216 = por %p214, %p215
    %p217 = scmp.ne.s32.totalorder %s205, %s206
    %p218 = scmp.eq.s32.totalorder %s23, 1
    %p219 = por %p217, %p218
    %p221 = scmp.ne.s32.totalorder %s206, %s220
    %p222 = scmp.eq.s32.totalorder %s23, 0
    %p223 = por %p221, %p222
    %s225 = sadd.s32 %s224, 1
    %p228 = scmp.eq.s32.totalorder %s17, 1
    %p229 = scmp.ne.s32.totalorder %s224, %s226
    %p230 = scmp.eq.s32.totalorder %s17, 0
    %p231 = por %p229, %p230
    %p232 = scmp.ne.s32.totalorder %s224, %s226
    %p233 = scmp.eq.s32.totalorder %s22, 1
    %p234 = por %p232, %p233
    %p235 = scmp.ne.s32.totalorder %s226, %s227
    %p236 = scmp.eq.s32.totalorder %s22, 0
    %p237 = por %p235, %p236
    %p238 = scmp.ne.s32.totalorder %s226, %s227
    %p239 = scmp.eq.s32.totalorder %s23, 1
    %p240 = por %p238, %p239
    %p242 = scmp.ne.s32.totalorder %s227, %s241
    %p243 = scmp.eq.s32.totalorder %s23, 0
    %p244 = por %p242, %p243
    %s246 = sadd.s32 %s245, 1
    %p249 = scmp.eq.s32.totalorder %s17, 1
    %p250 = scmp.ne.s32.totalorder %s245, %s247
    %p251 = scmp.eq.s32.totalorder %s17, 0
    %p252 = por %p250, %p251
    %p253 = scmp.ne.s32.totalorder %s245, %s247
    %p254 = scmp.eq.s32.totalorder %s22, 1
    %p255 = por %p253, %p254
    %p256 = scmp.ne.s32.totalorder %s247, %s248
    %p257 = scmp.eq.s32.totalorder %s22, 0
    %p258 = por %p256, %p257
    %p259 = scmp.ne.s32.totalorder %s247, %s248
    %p260 = scmp.eq.s32.totalorder %s23, 1
    %p261 = por %p259, %p260
    %p263 = scmp.ne.s32.totalorder %s248, %s262
    %p264 = scmp.eq.s32.totalorder %s23, 0
    %p265 = por %p263, %p264
    %s266 = ssub.s32 %s17, %s24
    %p267 = scmp.eq.s32.totalorder %s266, 0
    %s269 = sadd.s32 %s268, 1
    %s270 = scalar_select %p267, %s268, %s269
    %p273 = pneg %p267
    %p274 = scmp.eq.s32.totalorder %s17, 1
    %p275 = por %p273, %p274
    %p276 = scmp.ne.s32.totalorder %s268, %s271
    %p277 = scmp.eq.s32.totalorder %s17, 0
    %p278 = por %p276, %p277
    %p279 = scmp.ne.s32.totalorder %s268, %s271
    %p280 = scmp.eq.s32.totalorder %s22, 1
    %p281 = por %p279, %p280
    %p282 = scmp.ne.s32.totalorder %s271, %s272
    %p283 = scmp.eq.s32.totalorder %s22, 0
    %p284 = por %p282, %p283
    %p285 = scmp.ne.s32.totalorder %s271, %s272
    %p286 = scmp.eq.s32.totalorder %s23, 1
    %p287 = por %p285, %p286
    %p289 = scmp.ne.s32.totalorder %s272, %s288
    %p290 = scmp.eq.s32.totalorder %s23, 0
    %p291 = por %p289, %p290
    %p292 = scmp.le.s32.totalorder 1, %s17
    %p293 = scmp.lt.s32.totalorder %s17, 3
    %p294 = pnand %p292, %p293
    %p295 = pneg %p294
    // Predicated region
    $region9: #{tpu_custom_call.1} parent=5 // pred_check
      _
    $region10: #{tpu_custom_call.1} parent=5 // pred_check_branch
      %297 = sbr.rel (%p294) target = $region12
    $region11: #{tpu_custom_call.1} parent=5 // pred_region
      %s298 = ssub.s32 %s17, 1
      // Predicated region
      $region13: #{tpu_custom_call.1} parent=11 // pred_check
        %p299 = pneg %p90
      $region14: #{tpu_custom_call.1} parent=11 // pred_check_branch
        %301 = sbr.rel (%p299) target = $region16
      $region15: #{tpu_custom_call.1} parent=11 // pred_region
        _
      $region16: #{tpu_custom_call.1} parent=11 // pred_fallthru
        _
      // Predicated region
      $region17: #{tpu_custom_call.1} parent=11 // pred_check
        %p302 = pneg %p111
      $region18: #{tpu_custom_call.1} parent=11 // pred_check_branch
        %304 = sbr.rel (%p302) target = $region20
      $region19: #{tpu_custom_call.1} parent=11 // pred_region
        _
      $region20: #{tpu_custom_call.1} parent=11 // pred_fallthru
        _
      // Predicated region
      $region21: #{tpu_custom_call.1} parent=11 // pred_check
        %p305 = pneg %p132
      $region22: #{tpu_custom_call.1} parent=11 // pred_check_branch
        %307 = sbr.rel (%p305) target = $region24
      $region23: #{tpu_custom_call.1} parent=11 // pred_region
        _
      $region24: #{tpu_custom_call.1} parent=11 // pred_fallthru
        _
      // Predicated region
      $region25: #{tpu_custom_call.1} parent=11 // pred_check
        %p308 = pneg %p153
      $region26: #{tpu_custom_call.1} parent=11 // pred_check_branch
        %310 = sbr.rel (%p308) target = $region28
      $region27: #{tpu_custom_call.1} parent=11 // pred_region
        _
      $region28: #{tpu_custom_call.1} parent=11 // pred_fallthru
        _
      // Predicated region
      $region29: #{tpu_custom_call.1} parent=11 // pred_check
        %p311 = pneg %p174
      $region30: #{tpu_custom_call.1} parent=11 // pred_check_branch
        %313 = sbr.rel (%p311) target = $region32
      $region31: #{tpu_custom_call.1} parent=11 // pred_region
        _
      $region32: #{tpu_custom_call.1} parent=11 // pred_fallthru
        _
      // Predicated region
      $region33: #{tpu_custom_call.1} parent=11 // pred_check
        %p314 = pneg %p195
      $region34: #{tpu_custom_call.1} parent=11 // pred_check_branch
        %316 = sbr.rel (%p314) target = $region36
      $region35: #{tpu_custom_call.1} parent=11 // pred_region
        _
      $region36: #{tpu_custom_call.1} parent=11 // pred_fallthru
        _
      // Predicated region
      $region37: #{tpu_custom_call.1} parent=11 // pred_check
        %p317 = pneg %p216
      $region38: #{tpu_custom_call.1} parent=11 // pred_check_branch
        %319 = sbr.rel (%p317) target = $region40
      $region39: #{tpu_custom_call.1} parent=11 // pred_region
        _
      $region40: #{tpu_custom_call.1} parent=11 // pred_fallthru
        _
      // Predicated region
      $region41: #{tpu_custom_call.1} parent=11 // pred_check
        %p320 = pneg %p237
      $region42: #{tpu_custom_call.1} parent=11 // pred_check_branch
        %322 = sbr.rel (%p320) target = $region44
      $region43: #{tpu_custom_call.1} parent=11 // pred_region
        _
      $region44: #{tpu_custom_call.1} parent=11 // pred_fallthru
        _
      // Predicated region
      $region45: #{tpu_custom_call.1} parent=11 // pred_check
        %p323 = pneg %p258
      $region46: #{tpu_custom_call.1} parent=11 // pred_check_branch
        %325 = sbr.rel (%p323) target = $region48
      $region47: #{tpu_custom_call.1} parent=11 // pred_region
        _
      $region48: #{tpu_custom_call.1} parent=11 // pred_fallthru
        _
    $region12: #{tpu_custom_call.1} parent=5 // pred_fallthru
      _
    %p326 = scmp.lt.s32.totalorder %s17, 2
    // Predicated region
    $region49: #{tpu_custom_call.1} parent=5 // pred_check
      %p327 = pneg %p326
    $region50: #{tpu_custom_call.1} parent=5 // pred_check_branch
      %329 = sbr.rel (%p327) target = $region52
    $region51: #{tpu_custom_call.1} parent=5 // pred_region
      // Predicated region
      $region53: #{tpu_custom_call.1} parent=51 // pred_check
        %p330 = pneg %p37
      $region54: #{tpu_custom_call.1} parent=51 // pred_check_branch
        %332 = sbr.rel (%p330) target = $region56
      $region55: #{tpu_custom_call.1} parent=51 // pred_region
        %s333 = smul.u32 4, %s17
        %p334 = scmp.lt.s32.totalorder %s333, 7
        %s335 = scalar_select %p334, %s333, 7
        %s336 = smul.addr %s335, 4
        %s337 = scalar_lea.vmem %s0, %s336
        %s338 = smul.u32 4, %s17
      $region56: #{tpu_custom_call.1} parent=51 // pred_fallthru
        _
      // Predicated region
      $region57: #{tpu_custom_call.1} parent=51 // pred_check
        %p339 = pneg %p63
      $region58: #{tpu_custom_call.1} parent=51 // pred_check_branch
        %341 = sbr.rel (%p339) target = $region60
      $region59: #{tpu_custom_call.1} parent=51 // pred_region
        %s342 = smul.u32 4, %s17
        %p343 = scmp.lt.s32.totalorder %s342, 7
        %s344 = scalar_select %p343, %s342, 7
        %s345 = smul.addr %s344, 4
        %s346 = scalar_lea.vmem %s1, %s345
        %s347 = smul.u32 4, %s17
      $region60: #{tpu_custom_call.1} parent=51 // pred_fallthru
        _
    $region52: #{tpu_custom_call.1} parent=5 // pred_fallthru
      _
    %p348 = scmp.le.s32.totalorder 1, %s17
    %p349 = scmp.lt.s32.totalorder %s17, 3
    %p350 = pnand %p348, %p349
    %p351 = pneg %p350
    // Predicated region
    $region61: #{tpu_custom_call.1} parent=5 // pred_check
      _
    $region62: #{tpu_custom_call.1} parent=5 // pred_check_branch
      %353 = sbr.rel (%p350) target = $region64
    $region63: #{tpu_custom_call.1} parent=5 // pred_region
      %s354 = ssub.s32 %s17, 1
      %s355 = smul.u32 4, %s22
      %p356 = scmp.lt.s32.totalorder %s355, 7
      %s357 = scalar_select %p356, %s355, 7
      %s358 = smul.addr %s357, 4
      %s359 = scalar_lea.vmem %s0, %s358
      %p360 = pneg %p43
      %p361 = pneg %p40
      %s362 = smul.u32 4, %s22
      %p363 = scmp.lt.s32.totalorder %s362, 7
      %s364 = scalar_select %p363, %s362, 7
      %s365 = smul.addr %s364, 4
      %s366 = scalar_lea.vmem %s1, %s365
      %p367 = pneg %p69
      %p368 = pneg %p66
      %p369 = pneg %p90
      %p370 = pneg %p87
      %p371 = pneg %p111
      %p372 = pneg %p108
      %p373 = pneg %p132
      %p374 = pneg %p129
      %p375 = pneg %p153
      %p376 = pneg %p150
      %p377 = pneg %p174
      %p378 = pneg %p171
      %p379 = pneg %p195
      %p380 = pneg %p192
      %p381 = pneg %p216
      %p382 = pneg %p213
      %p383 = pneg %p237
      %p384 = pneg %p234
      %p385 = pneg %p258
      %p386 = pneg %p255
      %p387 = pneg %p284
      %p388 = pneg %p281
      %s389 = smul.u32 4, %s22
      %p390 = scmp.lt.s32.totalorder %s389, 7
      %s391 = scalar_select %p390, %s389, 7
      %s392 = smul.addr %s391, 8
      %s393 = scalar_lea.vmem %s11, %s392
      %s394 = smul.u32 4, %s22
      %p395 = scmp.lt.s32.totalorder %s394, 7
      %s396 = scalar_select %p395, %s394, 7
      %s397 = smul.addr %s396, 4
      %s398 = scalar_lea.vmem %s0, %s397
      %s399 = smul.u32 4, %s22
      %s400 = smul.u32 4, %s22
      %p401 = scmp.lt.s32.totalorder %s400, 7
      %s402 = scalar_select %p401, %s400, 7
      %s403 = smul.addr %s402, 4
      %s404 = scalar_lea.vmem %s1, %s403
      %s405 = smul.u32 4, %s22
      %s406 = smul.u32 4, %s22
      %p407 = scmp.lt.s32.totalorder %s406, 7
      %s408 = scalar_select %p407, %s406, 7
      %s409 = smul.addr %s408, 8
      %s410 = scalar_lea.vmem %s11, %s409
      %s411 = smul.u32 4, %s22
      %v413 = vld [vmem:[%s398] sm:$0xf]
      %v414 = vld [vmem:[%s398 + $0x4] sm:$0xf]
      %v415 = vld [vmem:[%s398 + $0x8] sm:$0xf]
      %v416 = vld [vmem:[%s398 + $0xc] sm:$0xf]
      %v417 = vld [vmem:[%s404] sm:$0xf]
      %v418 = vld [vmem:[%s404 + $0x4] sm:$0xf]
      %v419 = vld [vmem:[%s404 + $0x8] sm:$0xf]
      %v420 = vld [vmem:[%s404 + $0xc] sm:$0xf]
      %v421 = vld [vmem:[%s2] sm:$0xf]
      %v422 = vld [vmem:[%s2 + $0x4] sm:$0xf]
      %v423 = vld [vmem:[%s3] sm:$0x1]
      %v425 = vlaneseq
      %v426 = vshrl.u32 %v425, 7
      %v427 = vsub.s32 0, %v426
      %v428 = vrot.slane %v423, %v427
      %v434 = vunpack.c.l.b16 %v413
      %v435 = vunpack.c.l.b16 %v414
      %v436 = vunpack.c.l.b16 %v415
      %v437 = vunpack.c.l.b16 %v416
      %v438 = vpack.c.b16 %v435, %v434
      %v439 = vpack.c.b16 %v437, %v436
      %v442 = vunpack.c.l.b16 %v421
      %v443 = vunpack.c.l.b16 %v422
      %v444 = vpack.c.b16 %v443, %v442
      %vm446 = vcmask 130048
      %v448 = vsel %vm446, %v438, 0
      %v451 = vsel %vm446, %v439, 0
      %453 = vmatprep.subr.bf16.mxu0 0
      %454 = vmatpush1.bf16.msra.mxu0 %v444
      %455 = vmatprep.subr.bf16.mxu0 0
      %456 = vmatpush1.bf16.msra.mxu0 0
      %457 = vmatprep.subr.bf16.mxu0 0
      %458 = vmatpush1.bf16.msra.mxu0 0
      %459 = vmatprep.subr.bf16.mxu0 0
      %460 = vmatpush1.bf16.msra.mxu0 0
      %461 = vmatprep.subr.bf16.mxu0 0
      %462 = vmatpush1.bf16.msra.mxu0 0
      %463 = vmatprep.subr.bf16.mxu0 0
      %464 = vmatpush1.bf16.msra.mxu0 0
      %465 = vmatprep.subr.bf16.mxu0 0
      %466 = vmatpush1.bf16.msra.mxu0 0
      %467 = vmatprep.subr.bf16.mxu0 0
      %468 = vmatpush1.bf16.msra.mxu0 0
      %469 = vmatprep.subr.bf16.mxu0 0
      %470 = vmatpush1.bf16.msra.mxu0 0
      %471 = vmatprep.subr.bf16.mxu0 0
      %472 = vmatpush1.bf16.msra.mxu0 0
      %473 = vmatprep.subr.bf16.mxu0 0
      %474 = vmatpush1.bf16.msra.mxu0 0
      %475 = vmatprep.subr.bf16.mxu0 0
      %476 = vmatpush1.bf16.msra.mxu0 0
      %477 = vmatprep.subr.bf16.mxu0 0
      %478 = vmatpush1.bf16.msra.mxu0 0
      %479 = vmatprep.subr.bf16.mxu0 0
      %480 = vmatpush1.bf16.msra.mxu0 0
      %481 = vmatprep.subr.bf16.mxu0 0
      %482 = vmatpush1.bf16.msra.mxu0 0
      %483 = vmatprep.subr.bf16.mxu0 0
      %484 = vmatpush1.bf16.msra.mxu0 0
      %485 = vmatprep.mubr.bf16.mxu0 0
      %486 = vmatmul.mubr.bf16.gmra.mrb[0].mxu0 %v448
      %v487 = vpop.f32.mrb[0].mxu0
      %v488 = vadd.f32 %v428, %v487
      %v489 = vpop.f32.mrb[0].mxu0
      %v490 = vpop.f32.mrb[0].mxu0
      %v491 = vadd.f32 %v428, %v490
      %v492 = vpop.f32.mrb[0].mxu0
      %493 = vmatprep.mubr.bf16.mxu0 0
      %494 = vmatmul.mubr.bf16.gmra.mrb[0].mxu0 %v451
      %v495 = vpop.f32.mrb[0].mxu0
      %v496 = vadd.f32 %v428, %v495
      %v497 = vpop.f32.mrb[0].mxu0
      %v498 = vpop.f32.mrb[0].mxu0
      %v499 = vadd.f32 %v428, %v498
      %v500 = vpop.f32.mrb[0].mxu0
      %501 = vdwg.mxu0
      %v502 = vmax.f32 %v488, 0.0
      %v503 = vmax.f32 %v491, 0.0
      %v504 = vmax.f32 %v496, 0.0
      %v505 = vmax.f32 %v499, 0.0
      %vm506 = vcmp.ne.f32.partialorder %v488, %v488
      %vm507 = vcmp.ne.f32.partialorder %v491, %v491
      %vm508 = vcmp.ne.f32.partialorder %v496, %v496
      %vm509 = vcmp.ne.f32.partialorder %v499, %v499
      %v510 = vadd.f32 %v488, 0.0
      %v511 = vadd.f32 %v491, 0.0
      %v512 = vadd.f32 %v496, 0.0
      %v513 = vadd.f32 %v499, 0.0
      %v514 = vand.u32 2147483647, %v488
      %v515 = vand.u32 2147483647, %v491
      %v516 = vand.u32 2147483647, %v496
      %v517 = vand.u32 2147483647, %v499
      %v518 = vsub.f32 0.0, %v514
      %v519 = vsub.f32 0.0, %v515
      %v520 = vsub.f32 0.0, %v516
      %v521 = vsub.f32 0.0, %v517
      %v522 = vmul.f32 %v518, 1.442695
      %v523 = vpow.pop %v522
      %v524 = vmul.f32 %v519, 1.442695
      %v525 = vpow.pop %v524
      %v526 = vmul.f32 %v520, 1.442695
      %v527 = vpow.pop %v526
      %v528 = vmul.f32 %v521, 1.442695
      %v529 = vpow.pop %v528
      %v530 = vadd.f32 %v523, 1.0
      %v531 = vlog2.pop %v530
      %v532 = vmul.f32 %v531, 0.6931472
      %v533 = vmul.f32 -0.5, %v523
      %v534 = vadd.f32 %v533, 1.0
      %v535 = vmul.f32 %v534, %v523
      %v536 = vand.u32 2147483647, %v523
      %vm537 = vcmp.lt.f32.partialorder %v536, 0.0004427343
      %v538 = vsel %vm537, %v535, %v532
      %v539 = vadd.f32 %v525, 1.0
      %v540 = vlog2.pop %v539
      %v541 = vmul.f32 %v540, 0.6931472
      %v542 = vmul.f32 -0.5, %v525
      %v543 = vadd.f32 %v542, 1.0
      %v544 = vmul.f32 %v543, %v525
      %v545 = vand.u32 2147483647, %v525
      %vm546 = vcmp.lt.f32.partialorder %v545, 0.0004427343
      %v547 = vsel %vm546, %v544, %v541
      %v548 = vadd.f32 %v527, 1.0
      %v549 = vlog2.pop %v548
      %v550 = vmul.f32 %v549, 0.6931472
      %v551 = vmul.f32 -0.5, %v527
      %v552 = vadd.f32 %v551, 1.0
      %v553 = vmul.f32 %v552, %v527
      %v554 = vand.u32 2147483647, %v527
      %vm555 = vcmp.lt.f32.partialorder %v554, 0.0004427343
      %v556 = vsel %vm555, %v553, %v550
      %v557 = vadd.f32 %v529, 1.0
      %v558 = vlog2.pop %v557
      %v559 = vmul.f32 %v558, 0.6931472
      %v560 = vmul.f32 -0.5, %v529
      %v561 = vadd.f32 %v560, 1.0
      %v562 = vmul.f32 %v561, %v529
      %v563 = vand.u32 2147483647, %v529
      %vm564 = vcmp.lt.f32.partialorder %v563, 0.0004427343
      %v565 = vsel %vm564, %v562, %v559
      %v566 = vadd.f32 %v502, %v538
      %v567 = vadd.f32 %v503, %v547
      %v568 = vadd.f32 %v504, %v556
      %v569 = vadd.f32 %v505, %v565
      %v570 = vsel %vm506, %v510, %v566
      %v571 = vsel %vm507, %v511, %v567
      %v572 = vsel %vm508, %v512, %v568
      %v573 = vsel %vm509, %v513, %v569
      %v574 = vld [vmem:[%s4] sm:$0xf]
      %v575 = vld [vmem:[%s4 + $0x4] sm:$0xf]
      %v576 = vld [vmem:[%s4 + $0x8] sm:$0xf]
      %v577 = vld [vmem:[%s4 + $0xc] sm:$0xf]
      %v578 = vld [vmem:[%s5] sm:$0x1]
      %v580 = vlaneseq
      %v581 = vshrl.u32 %v580, 7
      %v582 = vsub.s32 0, %v581
      %v583 = vrot.slane %v578, %v582
      %v589 = vunpack.c.l.b16 %v417
      %v590 = vunpack.c.l.b16 %v418
      %v591 = vunpack.c.l.b16 %v419
      %v592 = vunpack.c.l.b16 %v420
      %v593 = vpack.c.b16 %v590, %v589
      %v594 = vpack.c.b16 %v592, %v591
      %v599 = vunpack.c.l.b16 %v574
      %v600 = vunpack.c.l.b16 %v575
      %v601 = vunpack.c.l.b16 %v576
      %v602 = vunpack.c.l.b16 %v577
      %v603 = vpack.c.b16 %v600, %v599
      %v604 = vpack.c.b16 %v602, %v601
      %vm607 = vcmask 261120
      %v609 = vsel %vm607, %v593, 0
      %v612 = vsel %vm607, %v594, 0
      %614 = vmatprep.subr.bf16.mxu0 0
      %615 = vmatpush1.bf16.msra.mxu0 %v603
      %616 = vmatprep.subr.bf16.mxu0 0
      %617 = vmatpush1.bf16.msra.mxu0 %v604
      %618 = vmatprep.subr.bf16.mxu0 0
      %619 = vmatpush1.bf16.msra.mxu0 0
      %620 = vmatprep.subr.bf16.mxu0 0
      %621 = vmatpush1.bf16.msra.mxu0 0
      %622 = vmatprep.subr.bf16.mxu0 0
      %623 = vmatpush1.bf16.msra.mxu0 0
      %624 = vmatprep.subr.bf16.mxu0 0
      %625 = vmatpush1.bf16.msra.mxu0 0
      %626 = vmatprep.subr.bf16.mxu0 0
      %627 = vmatpush1.bf16.msra.mxu0 0
      %628 = vmatprep.subr.bf16.mxu0 0
      %629 = vmatpush1.bf16.msra.mxu0 0
      %630 = vmatprep.subr.bf16.mxu0 0
      %631 = vmatpush1.bf16.msra.mxu0 0
      %632 = vmatprep.subr.bf16.mxu0 0
      %633 = vmatpush1.bf16.msra.mxu0 0
      %634 = vmatprep.subr.bf16.mxu0 0
      %635 = vmatpush1.bf16.msra.mxu0 0
      %636 = vmatprep.subr.bf16.mxu0 0
      %637 = vmatpush1.bf16.msra.mxu0 0
      %638 = vmatprep.subr.bf16.mxu0 0
      %639 = vmatpush1.bf16.msra.mxu0 0
      %640 = vmatprep.subr.bf16.mxu0 0
      %641 = vmatpush1.bf16.msra.mxu0 0
      %642 = vmatprep.subr.bf16.mxu0 0
      %643 = vmatpush1.bf16.msra.mxu0 0
      %644 = vmatprep.subr.bf16.mxu0 0
      %645 = vmatpush1.bf16.msra.mxu0 0
      %646 = vmatprep.mubr.bf16.mxu0 0
      %647 = vmatmul.mubr.bf16.gmra.mrb[0].mxu0 %v609
      %v648 = vpop.f32.mrb[0].mxu0
      %v649 = vadd.f32 %v583, %v648
      %v650 = vpop.f32.mrb[0].mxu0
      %v651 = vpop.f32.mrb[0].mxu0
      %v652 = vadd.f32 %v583, %v651
      %v653 = vpop.f32.mrb[0].mxu0
      %654 = vmatprep.mubr.bf16.mxu0 0
      %655 = vmatmul.mubr.bf16.gmra.mrb[0].mxu0 %v612
      %v656 = vpop.f32.mrb[0].mxu0
      %v657 = vadd.f32 %v583, %v656
      %v658 = vpop.f32.mrb[0].mxu0
      %v659 = vpop.f32.mrb[0].mxu0
      %v660 = vadd.f32 %v583, %v659
      %v661 = vpop.f32.mrb[0].mxu0
      %662 = vdwg.mxu0
      %v663 = vmax.f32 %v649, 0.0
      %v664 = vmax.f32 %v652, 0.0
      %v665 = vmax.f32 %v657, 0.0
      %v666 = vmax.f32 %v660, 0.0
      %vm667 = vcmp.ne.f32.partialorder %v649, %v649
      %vm668 = vcmp.ne.f32.partialorder %v652, %v652
      %vm669 = vcmp.ne.f32.partialorder %v657, %v657
      %vm670 = vcmp.ne.f32.partialorder %v660, %v660
      %v671 = vadd.f32 %v649, 0.0
      %v672 = vadd.f32 %v652, 0.0
      %v673 = vadd.f32 %v657, 0.0
      %v674 = vadd.f32 %v660, 0.0
      %v675 = vand.u32 2147483647, %v649
      %v676 = vand.u32 2147483647, %v652
      %v677 = vand.u32 2147483647, %v657
      %v678 = vand.u32 2147483647, %v660
      %v679 = vsub.f32 0.0, %v675
      %v680 = vsub.f32 0.0, %v676
      %v681 = vsub.f32 0.0, %v677
      %v682 = vsub.f32 0.0, %v678
      %v683 = vmul.f32 %v679, 1.442695
      %v684 = vpow.pop %v683
      %v685 = vmul.f32 %v680, 1.442695
      %v686 = vpow.pop %v685
      %v687 = vmul.f32 %v681, 1.442695
      %v688 = vpow.pop %v687
      %v689 = vmul.f32 %v682, 1.442695
      %v690 = vpow.pop %v689
      %v691 = vadd.f32 %v684, 1.0
      %v692 = vlog2.pop %v691
      %v693 = vmul.f32 %v692, 0.6931472
      %v694 = vmul.f32 -0.5, %v684
      %v695 = vadd.f32 %v694, 1.0
      %v696 = vmul.f32 %v695, %v684
      %v697 = vand.u32 2147483647, %v684
      %vm698 = vcmp.lt.f32.partialorder %v697, 0.0004427343
      %v699 = vsel %vm698, %v696, %v693
      %v700 = vadd.f32 %v686, 1.0
      %v701 = vlog2.pop %v700
      %v702 = vmul.f32 %v701, 0.6931472
      %v703 = vmul.f32 -0.5, %v686
      %v704 = vadd.f32 %v703, 1.0
      %v705 = vmul.f32 %v704, %v686
      %v706 = vand.u32 2147483647, %v686
      %vm707 = vcmp.lt.f32.partialorder %v706, 0.0004427343
      %v708 = vsel %vm707, %v705, %v702
      %v709 = vadd.f32 %v688, 1.0
      %v710 = vlog2.pop %v709
      %v711 = vmul.f32 %v710, 0.6931472
      %v712 = vmul.f32 -0.5, %v688
      %v713 = vadd.f32 %v712, 1.0
      %v714 = vmul.f32 %v713, %v688
      %v715 = vand.u32 2147483647, %v688
      %vm716 = vcmp.lt.f32.partialorder %v715, 0.0004427343
      %v717 = vsel %vm716, %v714, %v711
      %v718 = vadd.f32 %v690, 1.0
      %v719 = vlog2.pop %v718
      %v720 = vmul.f32 %v719, 0.6931472
      %v721 = vmul.f32 -0.5, %v690
      %v722 = vadd.f32 %v721, 1.0
      %v723 = vmul.f32 %v722, %v690
      %v724 = vand.u32 2147483647, %v690
      %vm725 = vcmp.lt.f32.partialorder %v724, 0.0004427343
      %v726 = vsel %vm725, %v723, %v720
      %v727 = vadd.f32 %v663, %v699
      %v728 = vadd.f32 %v664, %v708
      %v729 = vadd.f32 %v665, %v717
      %v730 = vadd.f32 %v666, %v726
      %v731 = vsel %vm667, %v671, %v727
      %v732 = vsel %vm668, %v672, %v728
      %v733 = vsel %vm669, %v673, %v729
      %v734 = vsel %vm670, %v674, %v730
      %v735 = vpack.c.bf16 %v571, %v570
      %v736 = vpack.c.bf16 %v573, %v572
      %v737 = vld [vmem:[%s6] sm:$0xf]
      %v738 = vld [vmem:[%s6 + $0x4] sm:$0xf]
      %v739 = vld [vmem:[%s6 + $0x8] sm:$0xf]
      %v740 = vld [vmem:[%s6 + $0xc] sm:$0xf]
      %v741 = vpack.c.bf16 %v732, %v731
      %v742 = vpack.c.bf16 %v734, %v733
      %v743 = vld [vmem:[%s7] sm:$0xf]
      %v744 = vld [vmem:[%s7 + $0x4] sm:$0xf]
      %v745 = vld [vmem:[%s7 + $0x8] sm:$0xf]
      %v746 = vld [vmem:[%s7 + $0xc] sm:$0xf]
      %v751 = vunpack.c.l.b16 %v743
      %v752 = vunpack.c.l.b16 %v744
      %v753 = vunpack.c.l.b16 %v745
      %v754 = vunpack.c.l.b16 %v746
      %v755 = vpack.c.b16 %v752, %v751
      %v756 = vpack.c.b16 %v754, %v753
      %v760 = vsel %vm607, %v741, 0
      %v763 = vsel %vm607, %v742, 0
      %765 = vmatprep.subr.bf16.mxu0 0
      %766 = vmatpush1.bf16.msra.mxu0 %v755
      %767 = vmatprep.subr.bf16.mxu0 0
      %768 = vmatpush1.bf16.msra.mxu0 %v756
      %769 = vmatprep.subr.bf16.mxu0 0
      %770 = vmatpush1.bf16.msra.mxu0 0
      %771 = vmatprep.subr.bf16.mxu0 0
      %772 = vmatpush1.bf16.msra.mxu0 0
      %773 = vmatprep.subr.bf16.mxu0 0
      %774 = vmatpush1.bf16.msra.mxu0 0
      %775 = vmatprep.subr.bf16.mxu0 0
      %776 = vmatpush1.bf16.msra.mxu0 0
      %777 = vmatprep.subr.bf16.mxu0 0
      %778 = vmatpush1.bf16.msra.mxu0 0
      %779 = vmatprep.subr.bf16.mxu0 0
      %780 = vmatpush1.bf16.msra.mxu0 0
      %781 = vmatprep.subr.bf16.mxu0 0
      %782 = vmatpush1.bf16.msra.mxu0 0
      %783 = vmatprep.subr.bf16.mxu0 0
      %784 = vmatpush1.bf16.msra.mxu0 0
      %785 = vmatprep.subr.bf16.mxu0 0
      %786 = vmatpush1.bf16.msra.mxu0 0
      %787 = vmatprep.subr.bf16.mxu0 0
      %788 = vmatpush1.bf16.msra.mxu0 0
      %789 = vmatprep.subr.bf16.mxu0 0
      %790 = vmatpush1.bf16.msra.mxu0 0
      %791 = vmatprep.subr.bf16.mxu0 0
      %792 = vmatpush1.bf16.msra.mxu0 0
      %793 = vmatprep.subr.bf16.mxu0 0
      %794 = vmatpush1.bf16.msra.mxu0 0
      %795 = vmatprep.subr.bf16.mxu0 0
      %796 = vmatpush1.bf16.msra.mxu0 0
      %797 = vmatprep.mubr.bf16.mxu0 0
      %798 = vmatmul.mubr.bf16.gmra.mrb[0].mxu0 %v760
      %v799 = vpop.f32.mrb[0].mxu0
      %v800 = vadd.f32 0.0, %v799
      %v801 = vpop.f32.mrb[0].mxu0
      %v802 = vpop.f32.mrb[0].mxu0
      %v803 = vadd.f32 0.0, %v802
      %v804 = vpop.f32.mrb[0].mxu0
      %805 = vmatprep.mubr.bf16.mxu0 0
      %806 = vmatmul.mubr.bf16.gmra.mrb[0].mxu0 %v763
      %v807 = vpop.f32.mrb[0].mxu0
      %v808 = vadd.f32 0.0, %v807
      %v809 = vpop.f32.mrb[0].mxu0
      %v810 = vpop.f32.mrb[0].mxu0
      %v811 = vadd.f32 0.0, %v810
      %v812 = vpop.f32.mrb[0].mxu0
      %813 = vdwg.mxu0
      %v818 = vunpack.c.l.b16 %v737
      %v819 = vunpack.c.l.b16 %v738
      %v820 = vunpack.c.l.b16 %v739
      %v821 = vunpack.c.l.b16 %v740
      %v822 = vpack.c.b16 %v819, %v818
      %v823 = vpack.c.b16 %v821, %v820
      %v827 = vsel %vm607, %v735, 0
      %v830 = vsel %vm607, %v736, 0
      %832 = vmatprep.subr.bf16.mxu0 0
      %833 = vmatpush1.bf16.msra.mxu0 %v822
      %834 = vmatprep.subr.bf16.mxu0 0
      %835 = vmatpush1.bf16.msra.mxu0 %v823
      %836 = vmatprep.subr.bf16.mxu0 0
      %837 = vmatpush1.bf16.msra.mxu0 0
      %838 = vmatprep.subr.bf16.mxu0 0
      %839 = vmatpush1.bf16.msra.mxu0 0
      %840 = vmatprep.subr.bf16.mxu0 0
      %841 = vmatpush1.bf16.msra.mxu0 0
      %842 = vmatprep.subr.bf16.mxu0 0
      %843 = vmatpush1.bf16.msra.mxu0 0
      %844 = vmatprep.subr.bf16.mxu0 0
      %845 = vmatpush1.bf16.msra.mxu0 0
      %846 = vmatprep.subr.bf16.mxu0 0
      %847 = vmatpush1.bf16.msra.mxu0 0
      %848 = vmatprep.subr.bf16.mxu0 0
      %849 = vmatpush1.bf16.msra.mxu0 0
      %850 = vmatprep.subr.bf16.mxu0 0
      %851 = vmatpush1.bf16.msra.mxu0 0
      %852 = vmatprep.subr.bf16.mxu0 0
      %853 = vmatpush1.bf16.msra.mxu0 0
      %854 = vmatprep.subr.bf16.mxu0 0
      %855 = vmatpush1.bf16.msra.mxu0 0
      %856 = vmatprep.subr.bf16.mxu0 0
      %857 = vmatpush1.bf16.msra.mxu0 0
      %858 = vmatprep.subr.bf16.mxu0 0
      %859 = vmatpush1.bf16.msra.mxu0 0
      %860 = vmatprep.subr.bf16.mxu0 0
      %861 = vmatpush1.bf16.msra.mxu0 0
      %862 = vmatprep.subr.bf16.mxu0 0
      %863 = vmatpush1.bf16.msra.mxu0 0
      %864 = vmatprep.mubr.bf16.mxu0 0
      %865 = vmatmul.mubr.bf16.gmra.mrb[0].mxu0 %v827
      %v866 = vpop.f32.mrb[0].mxu0
      %v867 = vadd.f32 %v800, %v866
      %v868 = vpop.f32.mrb[0].mxu0
      %v869 = vpop.f32.mrb[0].mxu0
      %v870 = vadd.f32 %v803, %v869
      %v871 = vpop.f32.mrb[0].mxu0
      %872 = vmatprep.mubr.bf16.mxu0 0
      %873 = vmatmul.mubr.bf16.gmra.mrb[0].mxu0 %v830
      %v874 = vpop.f32.mrb[0].mxu0
      %v875 = vadd.f32 %v808, %v874
      %v876 = vpop.f32.mrb[0].mxu0
      %v877 = vpop.f32.mrb[0].mxu0
      %v878 = vadd.f32 %v811, %v877
      %v879 = vpop.f32.mrb[0].mxu0
      %880 = vdwg.mxu0
      %v881 = vld [vmem:[%s8] sm:$0x1]
      %v883 = vlaneseq
      %v884 = vshrl.u32 %v883, 7
      %v885 = vsub.s32 0, %v884
      %v886 = vrot.slane %v881, %v885
      %v888 = vadd.f32 %v867, %v886
      %v889 = vadd.f32 %v870, %v886
      %v890 = vadd.f32 %v875, %v886
      %v891 = vadd.f32 %v878, %v886
      %v892 = vmax.f32 %v888, 0.0
      %v893 = vmax.f32 %v889, 0.0
      %v894 = vmax.f32 %v890, 0.0
      %v895 = vmax.f32 %v891, 0.0
      %vm896 = vcmp.ne.f32.partialorder %v888, %v888
      %vm897 = vcmp.ne.f32.partialorder %v889, %v889
      %vm898 = vcmp.ne.f32.partialorder %v890, %v890
      %vm899 = vcmp.ne.f32.partialorder %v891, %v891
      %v900 = vadd.f32 %v888, 0.0
      %v901 = vadd.f32 %v889, 0.0
      %v902 = vadd.f32 %v890, 0.0
      %v903 = vadd.f32 %v891, 0.0
      %v904 = vand.u32 2147483647, %v888
      %v905 = vand.u32 2147483647, %v889
      %v906 = vand.u32 2147483647, %v890
      %v907 = vand.u32 2147483647, %v891
      %v908 = vsub.f32 0.0, %v904
      %v909 = vsub.f32 0.0, %v905
      %v910 = vsub.f32 0.0, %v906
      %v911 = vsub.f32 0.0, %v907
      %v912 = vmul.f32 %v908, 1.442695
      %v913 = vpow.pop %v912
      %v914 = vmul.f32 %v909, 1.442695
      %v915 = vpow.pop %v914
      %v916 = vmul.f32 %v910, 1.442695
      %v917 = vpow.pop %v916
      %v918 = vmul.f32 %v911, 1.442695
      %v919 = vpow.pop %v918
      %v920 = vadd.f32 %v913, 1.0
      %v921 = vlog2.pop %v920
      %v922 = vmul.f32 %v921, 0.6931472
      %v923 = vmul.f32 -0.5, %v913
      %v924 = vadd.f32 %v923, 1.0
      %v925 = vmul.f32 %v924, %v913
      %v926 = vand.u32 2147483647, %v913
      %vm927 = vcmp.lt.f32.partialorder %v926, 0.0004427343
      %v928 = vsel %vm927, %v925, %v922
      %v929 = vadd.f32 %v915, 1.0
      %v930 = vlog2.pop %v929
      %v931 = vmul.f32 %v930, 0.6931472
      %v932 = vmul.f32 -0.5, %v915
      %v933 = vadd.f32 %v932, 1.0
      %v934 = vmul.f32 %v933, %v915
      %v935 = vand.u32 2147483647, %v915
      %vm936 = vcmp.lt.f32.partialorder %v935, 0.0004427343
      %v937 = vsel %vm936, %v934, %v931
      %v938 = vadd.f32 %v917, 1.0
      %v939 = vlog2.pop %v938
      %v940 = vmul.f32 %v939, 0.6931472
      %v941 = vmul.f32 -0.5, %v917
      %v942 = vadd.f32 %v941, 1.0
      %v943 = vmul.f32 %v942, %v917
      %v944 = vand.u32 2147483647, %v917
      %vm945 = vcmp.lt.f32.partialorder %v944, 0.0004427343
      %v946 = vsel %vm945, %v943, %v940
      %v947 = vadd.f32 %v919, 1.0
      %v948 = vlog2.pop %v947
      %v949 = vmul.f32 %v948, 0.6931472
      %v950 = vmul.f32 -0.5, %v919
      %v951 = vadd.f32 %v950, 1.0
      %v952 = vmul.f32 %v951, %v919
      %v953 = vand.u32 2147483647, %v919
      %vm954 = vcmp.lt.f32.partialorder %v953, 0.0004427343
      %v955 = vsel %vm954, %v952, %v949
      %v956 = vadd.f32 %v892, %v928
      %v957 = vadd.f32 %v893, %v937
      %v958 = vadd.f32 %v894, %v946
      %v959 = vadd.f32 %v895, %v955
      %v960 = vsel %vm896, %v900, %v956
      %v961 = vsel %vm897, %v901, %v957
      %v962 = vsel %vm898, %v902, %v958
      %v963 = vsel %vm899, %v903, %v959
      %v964 = vpack.c.bf16 %v961, %v960
      %v965 = vpack.c.bf16 %v963, %v962
      %v966 = vld [vmem:[%s9] sm:$0xf]
      %v967 = vld [vmem:[%s9 + $0x4] sm:$0xf]
      %v968 = vld [vmem:[%s9 + $0x8] sm:$0xf]
      %v969 = vld [vmem:[%s9 + $0xc] sm:$0xf]
      %v970 = vld [vmem:[%s10] sm:$0x1]
      %v972 = vlaneseq
      %v973 = vshrl.u32 %v972, 7
      %v974 = vsub.s32 0, %v973
      %v975 = vrot.slane %v970, %v974
      %v981 = vunpack.c.l.b16 %v966
      %v982 = vunpack.c.l.b16 %v967
      %v983 = vunpack.c.l.b16 %v968
      %v984 = vunpack.c.l.b16 %v969
      %v985 = vpack.c.b16 %v982, %v981
      %v986 = vpack.c.b16 %v984, %v983
      %v990 = vsel %vm607, %v964, 0
      %v993 = vsel %vm607, %v965, 0
      %995 = vmatprep.subr.bf16.mxu0 0
      %996 = vmatpush1.bf16.msra.mxu0 %v985
      %997 = vmatprep.subr.bf16.mxu0 0
      %998 = vmatpush1.bf16.msra.mxu0 %v986
      %999 = vmatprep.subr.bf16.mxu0 0
      %1000 = vmatpush1.bf16.msra.mxu0 0
      %1001 = vmatprep.subr.bf16.mxu0 0
      %1002 = vmatpush1.bf16.msra.mxu0 0
      %1003 = vmatprep.subr.bf16.mxu0 0
      %1004 = vmatpush1.bf16.msra.mxu0 0
      %1005 = vmatprep.subr.bf16.mxu0 0
      %1006 = vmatpush1.bf16.msra.mxu0 0
      %1007 = vmatprep.subr.bf16.mxu0 0
      %1008 = vmatpush1.bf16.msra.mxu0 0
      %1009 = vmatprep.subr.bf16.mxu0 0
      %1010 = vmatpush1.bf16.msra.mxu0 0
      %1011 = vmatprep.subr.bf16.mxu0 0
      %1012 = vmatpush1.bf16.msra.mxu0 0
      %1013 = vmatprep.subr.bf16.mxu0 0
      %1014 = vmatpush1.bf16.msra.mxu0 0
      %1015 = vmatprep.subr.bf16.mxu0 0
      %1016 = vmatpush1.bf16.msra.mxu0 0
      %1017 = vmatprep.subr.bf16.mxu0 0
      %1018 = vmatpush1.bf16.msra.mxu0 0
      %1019 = vmatprep.subr.bf16.mxu0 0
      %1020 = vmatpush1.bf16.msra.mxu0 0
      %1021 = vmatprep.subr.bf16.mxu0 0
      %1022 = vmatpush1.bf16.msra.mxu0 0
      %1023 = vmatprep.subr.bf16.mxu0 0
      %1024 = vmatpush1.bf16.msra.mxu0 0
      %1025 = vmatprep.subr.bf16.mxu0 0
      %1026 = vmatpush1.bf16.msra.mxu0 0
      %1027 = vmatprep.mubr.bf16.mxu0 0
      %1028 = vmatmul.mubr.bf16.gmra.mrb[0].mxu0 %v990
      %v1029 = vpop.f32.mrb[0].mxu0
      %v1030 = vadd.f32 %v975, %v1029
      %v1031 = vpop.f32.mrb[0].mxu0
      %v1032 = vpop.f32.mrb[0].mxu0
      %v1033 = vadd.f32 %v975, %v1032
      %v1034 = vpop.f32.mrb[0].mxu0
      %1035 = vmatprep.mubr.bf16.mxu0 0
      %1036 = vmatmul.mubr.bf16.gmra.mrb[0].mxu0 %v993
      %v1037 = vpop.f32.mrb[0].mxu0
      %v1038 = vadd.f32 %v975, %v1037
      %v1039 = vpop.f32.mrb[0].mxu0
      %v1040 = vpop.f32.mrb[0].mxu0
      %v1041 = vadd.f32 %v975, %v1040
      %v1042 = vpop.f32.mrb[0].mxu0
      %1043 = vdwg.mxu0
      %v1044 = vlaneseq
      %v1045 = vand.u32 %v1044, 127
      %vm1046 = vcmp.lt.s32.totalorder %v1045, 8
      %v1047 = vmul.f32 %v1030, 0.5
      %v1048 = vmul.f32 %v1033, 0.5
      %v1049 = vmul.f32 %v1038, 0.5
      %v1050 = vmul.f32 %v1041, 0.5
      %v1051 = vmul.f32 %v1047, 1.442695
      %v1052 = vpow.pop %v1051
      %v1053 = vmul.f32 %v1048, 1.442695
      %v1054 = vpow.pop %v1053
      %v1055 = vmul.f32 %v1049, 1.442695
      %v1056 = vpow.pop %v1055
      %v1057 = vmul.f32 %v1050, 1.442695
      %v1058 = vpow.pop %v1057
      %v1059 = vsel %vm1046, %v1030, %v1052
      %v1060 = vsel %vm1046, %v1033, %v1054
      %v1061 = vsel %vm1046, %v1038, %v1056
      %v1062 = vsel %vm1046, %v1041, %v1058
      %1063 = vst.msk [vmem:[%s410] sm:$0xff] %vm446, %v1059
      %1064 = vst.msk [vmem:[%s410 + $0x8] sm:$0xff] %vm446, %v1060
      %1065 = vst.msk [vmem:[%s410 + $0x10] sm:$0xff] %vm446, %v1061
      %1066 = vst.msk [vmem:[%s410 + $0x18] sm:$0xff] %vm446, %v1062
      %s1067 = smul.u32 4, %s22
      %p1068 = scmp.lt.s32.totalorder %s1067, 7
      %s1069 = scalar_select %p1068, %s1067, 7
      %s1070 = smul.addr %s1069, 8
      %s1071 = scalar_lea.vmem %s11, %s1070
      // Predicated region
      $region65: #{tpu_custom_call.1} parent=63 // pred_check
        %p1072 = pneg %p281
      $region66: #{tpu_custom_call.1} parent=63 // pred_check_branch
        %1074 = sbr.rel (%p1072) target = $region68
      $region67: #{tpu_custom_call.1} parent=63 // pred_region
        %s1075 = smul.u32 4, %s22
      $region68: #{tpu_custom_call.1} parent=63 // pred_fallthru
        _
    $region64: #{tpu_custom_call.1} parent=5 // pred_fallthru
      _
    %p1076 = scmp.le.s32.totalorder 2, %s17
    // Predicated region
    $region69: #{tpu_custom_call.1} parent=5 // pred_check
      %p1077 = pneg %p1076
    $region70: #{tpu_custom_call.1} parent=5 // pred_check_branch
      %1079 = sbr.rel (%p1077) target = $region72
    $region71: #{tpu_custom_call.1} parent=5 // pred_region
      %s1080 = ssub.s32 %s17, 2
      // Predicated region
      $region73: #{tpu_custom_call.1} parent=71 // pred_check
        %p1081 = pneg %p287
      $region74: #{tpu_custom_call.1} parent=71 // pred_check_branch
        %1083 = sbr.rel (%p1081) target = $region76
      $region75: #{tpu_custom_call.1} parent=71 // pred_region
        %s1084 = smul.u32 4, %s23
        %p1085 = scmp.lt.s32.totalorder %s1084, 7
        %s1086 = scalar_select %p1085, %s1084, 7
        %s1087 = smul.addr %s1086, 8
        %s1088 = scalar_lea.vmem %s11, %s1087
      $region76: #{tpu_custom_call.1} parent=71 // pred_fallthru
        _
    $region72: #{tpu_custom_call.1} parent=5 // pred_fallthru
      _
  $region6: #{tpu_custom_call.1} parent=0 // loop_footer
    %s21 = sadd.s32 1, %s17
  $region7: #{tpu_custom_call.1} parent=0 // loop_footer_branch
    %16 = sbr.rel target = $region3
  $region8: #{tpu_custom_call.1} parent=0 // loop_exit
    _

</llo_original>
